<compile_context>
chip_gen: v7x
topology: tpu7x:2x2x1
jax: 0.10.0
libtpu: 0.0.40
codegen_flags: <defaults>
</compile_context>

<pallas_src>
import functools

import jax
import jax.numpy as jnp
from jax.experimental import pallas as pl
from jax.experimental.pallas import tpu as pltpu


# ---------------------------------------------------------------------------
# Kernel 1: fused K/V projection (1x1 conv == channel matmul), computed once.
# ---------------------------------------------------------------------------
def _kv_proj_kernel(x_ref, wkv_ref, bkv_ref, kv_ref, *, compute_dtype):
    x = x_ref[0]                                            # (C, TP)
    w = wkv_ref[...]                                        # (2C, C)
    if compute_dtype is not None:
        x = x.astype(compute_dtype)
        w = w.astype(compute_dtype)
    kv = jax.lax.dot_general(w, x, (((1,), (0,)), ((), ())),
                             preferred_element_type=jnp.float32)
    kv = kv + bkv_ref[...]                                  # (2C, TP)
    kv_ref[0] = kv.astype(kv_ref.dtype)


# ---------------------------------------------------------------------------
# Kernel 2: flash attention + output projection + GELU + residual.
# grid = (B, nq, nk); kv axis is the innermost ("arbitrary") streaming axis.
# ---------------------------------------------------------------------------
def _attn_kernel(xq_ref, kv_ref, wq_ref, bq_ref, wp_ref, bp_ref, o_ref,
                 q_scr, m_scr, l_scr, acc_scr, *, compute_dtype):
    C = wq_ref.shape[0]
    ki = pl.program_id(2)
    nk = pl.num_programs(2)

    # ---- init (first kv tile of this (batch, q tile)): project q, reset state
    @pl.when(ki == 0)
    def _init():
        xq = xq_ref[0]                                      # (C, TQ)
        wq = wq_ref[...]                                    # (C, C), scale folded in
        if compute_dtype is not None:
            xq = xq.astype(compute_dtype)
            wq = wq.astype(compute_dtype)
        qc = jax.lax.dot_general(wq, xq, (((1,), (0,)), ((), ())),
                                 preferred_element_type=jnp.float32)
        qc = qc + bq_ref[...]                               # (C, TQ)
        # One transpose per q tile (amortized over all nk kv steps) so every
        # per-step matmul below is MXU-canonical / trans_b.
        q_scr[...] = jnp.transpose(qc, (1, 0))              # (TQ, C)
        m_scr[...] = jnp.full_like(m_scr, -jnp.inf)
        l_scr[...] = jnp.zeros_like(l_scr)
        acc_scr[...] = jnp.zeros_like(acc_scr)

    # ---- stream one precomputed kv tile (no re-projection)
    kv = kv_ref[0]                                          # (2C, TKV)
    k = kv[:C, :]                                           # (C, TKV)
    v = kv[C:, :]                                           # (C, TKV)
    q = q_scr[...]
    if compute_dtype is not None:
        q = q.astype(compute_dtype)                         # kv already compute dtype

    # scores (TQ, TKV): canonical (M,K)@(K,N) matmul.
    s = jax.lax.dot_general(q, k, (((1,), (0,)), ((), ())),
                            preferred_element_type=jnp.float32)

    # ---- online softmax over the kv axis (last axis of s)
    m_prev = m_scr[...]                                     # (TQ, 1)
    m_new = jnp.maximum(m_prev, jnp.max(s, axis=1, keepdims=True))
    alpha = jnp.exp(m_prev - m_new)                         # (TQ, 1)
    p = jnp.exp(s - m_new)                                  # (TQ, TKV)
    l_scr[...] = alpha * l_scr[...] + jnp.sum(p, axis=1, keepdims=True)
    pd = p if compute_dtype is None else p.astype(compute_dtype)
    # acc (TQ, C) += p @ v^T  (contract last dims of both: MXU trans_b form).
    acc_scr[...] = alpha * acc_scr[...] + jax.lax.dot_general(
        pd, v, (((1,), (1,)), ((), ())), preferred_element_type=jnp.float32)
    m_scr[...] = m_new

    # ---- finalize (last kv tile): normalize, project, GELU, residual, store
    @pl.when(ki == nk - 1)
    def _finalize():
        inv_l = pl.reciprocal(l_scr[...], approx=compute_dtype is not None)
        attn = acc_scr[...] * inv_l                         # (TQ, C)
        attn_c = jnp.transpose(attn, (1, 0))                # (C, TQ), once per q tile
        wp = wp_ref[...]
        if compute_dtype is not None:
            attn_c = attn_c.astype(compute_dtype)
            wp = wp.astype(compute_dtype)
        h = jax.lax.dot_general(wp, attn_c, (((1,), (0,)), ((), ())),
                                preferred_element_type=jnp.float32)
        h = h + bp_ref[...]                                 # (C, TQ)
        h = jax.nn.gelu(h, approximate=False)               # exact erf (torch nn.GELU)
        o_ref[0] = (xq_ref[0] + h).astype(o_ref.dtype)


# ---------------------------------------------------------------------------
# Host-side helpers
# ---------------------------------------------------------------------------
def _pick_tile(E, target):
    """Largest lane-aligned tile <= target that divides E (else the whole E)."""
    if E <= target or E % 128 != 0:
        return E
    t = (target // 128) * 128
    while t >= 128:
        if E % t == 0:
            return t
        t -= 128
    return E


def _vmem_capacity_bytes():
    try:
        return int(pltpu.get_tpu_info().vmem_capacity_bytes)
    except Exception:
        return 64 << 20   # conservative: fits every generation (v7x has 64 MiB)


def _buffered_spec(block_shape, index_map, buffer_count):
    """BlockSpec with optional N-deep pipelining; graceful fallback to default."""
    if buffer_count <= 2:
        return pl.BlockSpec(block_shape, index_map)
    try:
        return pl.BlockSpec(block_shape, index_map,
                            pipeline_mode=pl.Buffered(buffer_count))
    except Exception:
        return pl.BlockSpec(block_shape, index_map)


def _attn_vmem_bytes(C, TQ, TKV, kv_itemsize, kv_bufs):
    f32 = 4
    return (
        2 * C * TQ * f32                        # x q-tile (double-buffered)
        + kv_bufs * 2 * C * TKV * kv_itemsize   # streamed kv tiles
        + 2 * (2 * C * C + 2 * C) * f32         # wq/wp + biases (double-buffered)
        + 2 * C * TQ * f32                      # output tile (double-buffered)
        + (2 * TQ * C + 2 * TQ) * f32           # q/acc scratch + m/l state
        + 3 * TQ * TKV * f32                    # score / p / exp temporaries
        + 3 * TQ * C * f32                      # transpose & projection temporaries
    )


def attn_block(x, wq, bq, wk, bk, wv, bv, wp, bp, *,
               tq=None, tkv=None, use_bf16=False):
    """x: (B, C, E) float32 (PyTorch NCE layout). Returns (B, C, E)."""
    B, C, E = x.shape
    compute_dtype = jnp.bfloat16 if use_bf16 else None
    kv_dtype = jnp.bfloat16 if use_bf16 else jnp.float32
    kv_itemsize = 2 if use_bf16 else 4

    # ---- generation-aware tile targets / VMEM budget -------------------------
    cap = _vmem_capacity_bytes()
    budget = min(int(0.9 * cap), 120 << 20)
    big_vmem = cap >= (100 << 20)              # v5e / v6e (128 MiB); v7x is 64 MiB
    if tq is None:
        tq = 1024 if big_vmem else 512
    if tkv is None:
        tkv = 1024 if big_vmem else 512
    TQ = _pick_tile(E, tq)
    TKV = _pick_tile(E, tkv)

    # Megacore: keep B * nq >= 2 so both TensorCores get work on v7x.
    if B * (E // TQ) < 2 and E % 128 == 0 and E >= 256:
        TQ = _pick_tile(E, E // 2)

    # Shrink tiles until the declared VMEM need fits the physical budget.
    # TODO(synk): large E that is not a multiple of 128 falls back to a single
    # whole-E tile; a padding path would be needed for that to stay in budget.
    kv_bufs = 3
    for _ in range(16):
        if _attn_vmem_bytes(C, TQ, TKV, kv_itemsize, kv_bufs) + (6 << 20) <= budget:
            break
        if E % 128 != 0:
            break
        if TKV >= TQ and TKV >= 256:
            TKV = _pick_tile(E, TKV // 2)
        elif TQ >= 256:
            TQ = _pick_tile(E, TQ // 2)
        else:
            break
    nq, nk = E // TQ, E // TKV
    if nk < 3:
        kv_bufs = 2

    # ---- host-side parameter prep (free): fold softmax scale, fuse k/v -------
    scale = jnp.float32(C) ** jnp.float32(-0.5)
    wq_s = (wq * scale).astype(jnp.float32)                       # (C, C)
    bq_s = (bq * scale).reshape(C, 1).astype(jnp.float32)         # (C, 1)
    wkv = jnp.concatenate([wk, wv], axis=0).astype(jnp.float32)   # (2C, C)
    bkv = jnp.concatenate([bk, bv], axis=0).reshape(2 * C, 1).astype(jnp.float32)
    wp_f = wp.astype(jnp.float32)
    bp_f = bp.reshape(C, 1).astype(jnp.float32)

    # ---- kernel 1: K/V projection computed once per sequence tile ------------
    TP = TKV
    proj_need = (2 * C * TP * 4 + 2 * (2 * C * C + 2 * C) * 4
                 + 2 * 2 * C * TP * kv_itemsize + 2 * 2 * C * TP * 4)
    proj_vmem = int(min(max(proj_need + (4 << 20), 16 << 20), budget))
    kvbuf = pl.pallas_call(
        functools.partial(_kv_proj_kernel, compute_dtype=compute_dtype),
        out_shape=jax.ShapeDtypeStruct((B, 2 * C, E), kv_dtype),
        grid=(B, E // TP),
        in_specs=[
            pl.BlockSpec((1, C, TP), lambda b, t: (b, 0, t)),     # x tile
            pl.BlockSpec((2 * C, C), lambda b, t: (0, 0)),        # fused k/v weights
            pl.BlockSpec((2 * C, 1), lambda b, t: (0, 0)),        # fused k/v bias
        ],
        out_specs=pl.BlockSpec((1, 2 * C, TP), lambda b, t: (b, 0, t)),
        compiler_params=pltpu.CompilerParams(
            dimension_semantics=("parallel", "parallel"),
            vmem_limit_bytes=proj_vmem),
    )(x, wkv, bkv)

    # ---- kernel 2: flash attention + proj/GELU/residual ----------------------
    need = _attn_vmem_bytes(C, TQ, TKV, kv_itemsize, kv_bufs)
    vmem_limit = int(min(max(int(1.15 * need) + (6 << 20), 32 << 20), budget))

    full = lambda b, qi, ki: (0, 0)
    out = pl.pallas_call(
        functools.partial(_attn_kernel, compute_dtype=compute_dtype),
        out_shape=jax.ShapeDtypeStruct((B, C, E), x.dtype),
        grid=(B, nq, nk),
        in_specs=[
            pl.BlockSpec((1, C, TQ), lambda b, qi, ki: (b, 0, qi)),   # x (q tile + residual)
            _buffered_spec((1, 2 * C, TKV),                           # precomputed kv stream
                           lambda b, qi, ki: (b, 0, ki), kv_bufs),
            pl.BlockSpec((C, C), full),        # wq (pre-scaled)
            pl.BlockSpec((C, 1), full),        # bq (pre-scaled)
            pl.BlockSpec((C, C), full),        # wp
            pl.BlockSpec((C, 1), full),        # bp
        ],
        out_specs=pl.BlockSpec((1, C, TQ), lambda b, qi, ki: (b, 0, qi)),
        scratch_shapes=[
            pltpu.VMEM((TQ, C), jnp.float32),  # q tile (token-major)
            pltpu.VMEM((TQ, 1), jnp.float32),  # running max
            pltpu.VMEM((TQ, 1), jnp.float32),  # running sum
            pltpu.VMEM((TQ, C), jnp.float32),  # output accumulator
        ],
        compiler_params=pltpu.CompilerParams(
            dimension_semantics=("parallel", "parallel", "arbitrary"),
            vmem_limit_bytes=vmem_limit),
    )(x, kvbuf, wq_s, bq_s, wp_f, bp_f)
    return out


# ---------------------------------------------------------------------------
# Pure-JAX reference (mirrors the PyTorch forward exactly) and test params
# ---------------------------------------------------------------------------
def reference(x, wq, bq, wk, bk, wv, bv, wp, bp):
    B, C, E = x.shape
    conv1x1 = lambda z, w, b: jnp.einsum('oc,bce->boe', w, z) + b[None, :, None]
    q = conv1x1(x, wq, bq)
    k = conv1x1(x, wk, bk)
    v = conv1x1(x, wv, bv)
    q = jnp.transpose(q, (0, 2, 1))                        # (B, E, C)
    w = jnp.einsum('bec,bcf->bef', q, k) * (C ** -0.5)     # (B, E, E)
    w = jax.nn.softmax(w, axis=-1)
    vt = jnp.transpose(v, (0, 2, 1))                       # (B, E, C)
    h = jnp.einsum('bef,bfc->bec', w, vt)                  # (B, E, C)
    h = jnp.transpose(h, (0, 2, 1))                        # (B, C, E)
    h = conv1x1(h, wp, bp)
    h = jax.nn.gelu(h, approximate=False)
    return x + h


def _make_params(key, C):
    kq, kk, kv, kp, kbp = jax.random.split(key, 5)
    std = (2.0 / C) ** 0.5                                  # kaiming-normal-ish (fan_in = C)
    wq = std * jax.random.normal(kq, (C, C), dtype=jnp.float32)
    wk = std * jax.random.normal(kk, (C, C), dtype=jnp.float32)
    wv = std * jax.random.normal(kv, (C, C), dtype=jnp.float32)
    bound = 1.0 / (C ** 0.5)
    wp = jax.random.uniform(kp, (C, C), minval=-bound, maxval=bound, dtype=jnp.float32)
    bp = jax.random.uniform(kbp, (C,), minval=-bound, maxval=bound, dtype=jnp.float32)
    bq = jnp.zeros((C,), jnp.float32)
    bk = jnp.zeros((C,), jnp.float32)
    bv = jnp.zeros((C,), jnp.float32)
    return wq, bq, wk, bk, wv, bv, wp, bp


if __name__ == "__main__":
    # NOTE: self.batch_norm and self.dropout are defined in __init__ but never
    # used in forward(), so they are intentionally omitted here.
    key = jax.random.PRNGKey(0)
    k1, k2, k3, k4 = jax.random.split(key, 4)

    # Case 1: multi-tile flash path, f32 exact numerics.  grid = (2, 3, 3),
    # nk = 3 so the 3-deep kv buffering path is exercised.
    B, C, E = 2, 8, 384
    x = jax.random.normal(k1, (B, C, E), dtype=jnp.float32)
    params = _make_params(k2, C)
    out = jax.block_until_ready(attn_block(x, *params, tq=128, tkv=128))
    ref = reference(x, *params)
    assert out.shape == (B, C, E)
    assert jnp.allclose(out, ref, atol=5e-5, rtol=5e-5), "mismatch (tiled f32 path)"

    # Case 2: tiny-shape fallback (single whole-E tile), matches module defaults.
    B2, C2, E2 = 2, 4, 16
    x2 = jax.random.normal(k3, (B2, C2, E2), dtype=jnp.float32)
    params2 = _make_params(k4, C2)
    out2 = jax.block_until_ready(attn_block(x2, *params2))
    ref2 = reference(x2, *params2)
    assert out2.shape == (B2, C2, E2)
    assert jnp.allclose(out2, ref2, atol=5e-5, rtol=5e-5), "mismatch (fallback path)"

    # Case 3: optional bf16 MXU-operand path (intentionally relaxed numerics).
    out3 = jax.block_until_ready(attn_block(x, *params, tq=128, tkv=128, use_bf16=True))
    assert out3.shape == (B, C, E)
    assert jnp.allclose(out3, ref, atol=2e-1, rtol=2e-1), "mismatch (bf16 path)"

    print("KERNEL_OK")
</pallas_src>

<mosaic_0001>
module attributes {stable_mosaic.version = 11 : i64} {
  func.func @_kv_proj_kernel(%arg0: i32, %arg1: i32, %arg2: memref<1x8x128xf32, #tpu.memory_space<vmem>>, %arg3: memref<16x8xf32, #tpu.memory_space<vmem>>, %arg4: memref<16x1xf32, #tpu.memory_space<vmem>>, %arg5: memref<1x16x128xf32, #tpu.memory_space<vmem>>) attributes {dimension_semantics = [#tpu.dimension_semantics<parallel>, #tpu.dimension_semantics<parallel>], iteration_bounds = array<i64: 2, 3>, scalar_prefetch = 0 : i64, scratch_operands = 0 : i64, tpu.core_type = #tpu.core_type<tc>, window_params = [{transform_indices = @transform_0, window_bounds = array<i64: 1, 8, 128>}, {pipeline_mode = #tpu.pipeline_mode<synchronous>, transform_indices = @transform_1, window_bounds = array<i64: 16, 8>}, {pipeline_mode = #tpu.pipeline_mode<synchronous>, transform_indices = @transform_2, window_bounds = array<i64: 16, 1>}, {transform_indices = @transform_3, window_bounds = array<i64: 1, 16, 128>}]} {
    %c0 = arith.constant 0 : index
    %c0_0 = arith.constant 0 : index
    %c0_1 = arith.constant 0 : index
    %0 = vector.load %arg2[%c0, %c0_0, %c0_1] : memref<1x8x128xf32, #tpu.memory_space<vmem>>, vector<1x8x128xf32>
    %1 = vector.shape_cast %0 : vector<1x8x128xf32> to vector<8x128xf32>
    %c0_2 = arith.constant 0 : index
    %c0_3 = arith.constant 0 : index
    %2 = vector.load %arg3[%c0_2, %c0_3] : memref<16x8xf32, #tpu.memory_space<vmem>>, vector<16x8xf32>
    %cst = arith.constant dense<0.000000e+00> : vector<16x128xf32>
    %3 = tpu.matmul %2, %1, %cst {dimension_numbers = #tpu.dot_dimension_numbers<[1], [0], [0], [1], [0, 0, 1, 1], [], []>} : vector<16x8xf32>, vector<8x128xf32>, vector<16x128xf32> -> vector<16x128xf32>
    %c0_4 = arith.constant 0 : index
    %c0_5 = arith.constant 0 : index
    %4 = vector.load %arg4[%c0_4, %c0_5] : memref<16x1xf32, #tpu.memory_space<vmem>>, vector<16x1xf32>
    %5 = vector.broadcast %4 : vector<16x1xf32> to vector<16x128xf32>
    %6 = arith.addf %3, %5 : vector<16x128xf32>
    %c0_6 = arith.constant 0 : index
    %c0_7 = arith.constant 0 : index
    %c0_8 = arith.constant 0 : index
    %7 = vector.load %arg5[%c0_6, %c0_7, %c0_8] : memref<1x16x128xf32, #tpu.memory_space<vmem>>, vector<1x16x128xf32>
    %8 = vector.shape_cast %7 : vector<1x16x128xf32> to vector<16x128xf32>
    %9 = vector.shape_cast %6 : vector<16x128xf32> to vector<1x16x128xf32>
    tpu.vector_store %arg5[%c0_6, %c0_7, %c0_8], %9 {strides = array<i32>} : memref<1x16x128xf32, #tpu.memory_space<vmem>>, vector<1x16x128xf32>,
    return
  }
  func.func @transform_0(%arg0: i32, %arg1: i32) -> (i32, i32, i32) {
    %c0_i32 = arith.constant 0 : i32
    %c0_i32_0 = arith.constant 0 : i32
    return %arg0, %c0_i32, %arg1 : i32, i32, i32
  }
  func.func @transform_1(%arg0: i32, %arg1: i32) -> (i32, i32) {
    %c0_i32 = arith.constant 0 : i32
    %c0_i32_0 = arith.constant 0 : i32
    %c0_i32_1 = arith.constant 0 : i32
    return %c0_i32, %c0_i32_0 : i32, i32
  }
  func.func @transform_2(%arg0: i32, %arg1: i32) -> (i32, i32) {
    %c0_i32 = arith.constant 0 : i32
    %c0_i32_0 = arith.constant 0 : i32
    %c0_i32_1 = arith.constant 0 : i32
    return %c0_i32, %c0_i32_0 : i32, i32
  }
  func.func @transform_3(%arg0: i32, %arg1: i32) -> (i32, i32, i32) {
    %c0_i32 = arith.constant 0 : i32
    %c0_i32_0 = arith.constant 0 : i32
    return %arg0, %c0_i32, %arg1 : i32, i32, i32
  }
}

</mosaic_0001>

<llo_original>
// kernel: tpu_custom_call.1
$region0: #{tpu_custom_call.1}
  #allocation0 [shape = 'u32[]', space=smem, size = 0x4, offset = 0x4, fixed_abs, tag = 'smem constant byte address 0x4 - core index']
  #allocation1 [shape = 'u32[144,128]{1,0:T(1,128)}', space=vmem, size = 0x12000, scoped, tag = 'internal scratch']
  %s0 = inlined_call_operand.hbm [shape: f32[2,8,384], index: 0, kind: input, shape index: {}]
  %s1 = inlined_call_operand.vmem [shape: f32[16,8], index: 1, kind: input, shape index: {}]
  %s2 = inlined_call_operand.vmem [shape: f32[16,1], index: 2, kind: input, shape index: {}]
  %s3 = inlined_call_operand.hbm [shape: f32[2,16,384], index: 3, kind: output, shape index: {}]
  %s4 = sld [smem:[#allocation0]]
  $region49: #{tpu_custom_call.1} parent=0
    _
  %s6 = ssub.s32 1, %s4
  %s7 = scalar_select 0, %s6, %s4
  $region1: #{tpu_custom_call.1} parent=0
    #allocation2 [shape = 'u8[8192]{0}', space=vmem, size = 0x2000, scoped, tag = 'input window, operand 0']
    #allocation3 [shape = 's32[2]{0}', space=sflag, size = 0x8, scoped, tag = 'scoped memory for tpu_custom_call.1']
    #allocation4 [shape = 's32[2]{0}', space=sflag, size = 0x8, scoped, tag = 'scoped memory for tpu_custom_call.1']
    #allocation5 [shape = 'u8[16384]{0}', space=vmem, size = 0x4000, scoped, tag = 'output window, operand 0']
    %8 = vsyncpa [#allocation3], 0
    %s9 = scalar_lea.sflag [#allocation3], 1
    %10 = vsyncpa %s9, 0
    %11 = vsyncpa [#allocation4], 0
    %s12 = scalar_lea.sflag [#allocation4], 1
    %13 = vsyncpa %s12, 0
    loop: start=0, step=1, limit=8
    $region2: #{tpu_custom_call.1} parent=1 // loop_pre_header
      _
    $region3: #{tpu_custom_call.1} parent=1 // loop_header
      %s15 = sphi 0, %s19
      %p16 = scmp.ge.s32.totalorder %s15, 8
      %s22 = sphi 0, %s34
      %s23 = sphi 0, %s30
      %s24 = sphi 0, %s22
      %s25 = sphi 0, %s23
      %s26 = sphi 0, %s24
      %s27 = sphi 0, %s25
      %s39 = sphi 0, %s41
      %s42 = sphi 0, %s39
      %s43 = sphi 0, %s42
      %s59 = sphi 0, %s43
      %s63 = sphi 0, %s63
      %s65 = sphi 0, %s63
      %s66 = sphi 0, %s65
      %s80 = sphi 0, %s66
      %s84 = sphi 0, %s84
      %s86 = sphi 0, %s84
      %s87 = sphi 0, %s86
      %s101 = sphi 0, %s87
      %s109 = sphi 0, %s111
      %s112 = sphi 0, %s109
      %s113 = sphi 0, %s112
      %s129 = sphi 0, %s113
    $region4: #{tpu_custom_call.1} parent=1 // loop_header_branch
      %18 = sbr.rel (%p16) target = $region8
    $region5: #{tpu_custom_call.1} parent=1 // loop_body
      %s20 = ssub.s32 %s15, 1
      %s21 = ssub.s32 %s15, 2
      %s28 = sadd.s32 1, %s23
      %p29 = scmp.ge.s32.totalorder %s28, 3
      %s30 = scalar_select %p29, 0, %s28
      %s31 = sadd.s32 1, %s22
      %s32 = scalar_select %p29, %s31, %s22
      %p33 = scmp.ge.s32.totalorder %s32, 2
      %s34 = scalar_select %p33, 0, %s32
      %s35 = ssub.s32 %s22, %s34
      %s36 = ssub.s32 %s23, %s30
      %s37 = sor.u32 %s35, %s36
      %p38 = scmp.eq.s32.totalorder %s37, 0
      %s40 = sadd.s32 %s39, 1
      %s41 = scalar_select %p38, %s39, %s40
      %p44 = pneg %p38
      %p45 = scmp.eq.s32.totalorder %s15, 5
      %p46 = por %p44, %p45
      %p47 = scmp.ne.s32.totalorder %s39, %s42
      %p48 = scmp.eq.s32.totalorder %s15, 0
      %p49 = por %p47, %p48
      %p50 = scmp.ne.s32.totalorder %s39, %s42
      %p51 = scmp.eq.s32.totalorder %s20, 5
      %p52 = por %p50, %p51
      %p53 = scmp.ne.s32.totalorder %s42, %s43
      %p54 = scmp.eq.s32.totalorder %s20, 0
      %p55 = por %p53, %p54
      %p56 = scmp.ne.s32.totalorder %s42, %s43
      %p57 = scmp.eq.s32.totalorder %s21, 5
      %p58 = por %p56, %p57
      %p60 = scmp.ne.s32.totalorder %s43, %s59
      %p61 = scmp.eq.s32.totalorder %s21, 0
      %p62 = por %p60, %p61
      %s64 = sadd.s32 %s63, 1
      %p67 = scmp.eq.s32.totalorder %s15, 5
      %p68 = scmp.ne.s32.totalorder %s63, %s65
      %p69 = scmp.eq.s32.totalorder %s15, 0
      %p70 = por %p68, %p69
      %p71 = scmp.ne.s32.totalorder %s63, %s65
      %p72 = scmp.eq.s32.totalorder %s20, 5
      %p73 = por %p71, %p72
      %p74 = scmp.ne.s32.totalorder %s65, %s66
      %p75 = scmp.eq.s32.totalorder %s20, 0
      %p76 = por %p74, %p75
      %p77 = scmp.ne.s32.totalorder %s65, %s66
      %p78 = scmp.eq.s32.totalorder %s21, 5
      %p79 = por %p77, %p78
      %p81 = scmp.ne.s32.totalorder %s66, %s80
      %p82 = scmp.eq.s32.totalorder %s21, 0
      %p83 = por %p81, %p82
      %s85 = sadd.s32 %s84, 1
      %p88 = scmp.eq.s32.totalorder %s15, 5
      %p89 = scmp.ne.s32.totalorder %s84, %s86
      %p90 = scmp.eq.s32.totalorder %s15, 0
      %p91 = por %p89, %p90
      %p92 = scmp.ne.s32.totalorder %s84, %s86
      %p93 = scmp.eq.s32.totalorder %s20, 5
      %p94 = por %p92, %p93
      %p95 = scmp.ne.s32.totalorder %s86, %s87
      %p96 = scmp.eq.s32.totalorder %s20, 0
      %p97 = por %p95, %p96
      %p98 = scmp.ne.s32.totalorder %s86, %s87
      %p99 = scmp.eq.s32.totalorder %s21, 5
      %p100 = por %p98, %p99
      %p102 = scmp.ne.s32.totalorder %s87, %s101
      %p103 = scmp.eq.s32.totalorder %s21, 0
      %p104 = por %p102, %p103
      %s105 = ssub.s32 %s22, %s34
      %s106 = ssub.s32 %s23, %s30
      %s107 = sor.u32 %s105, %s106
      %p108 = scmp.eq.s32.totalorder %s107, 0
      %s110 = sadd.s32 %s109, 1
      %s111 = scalar_select %p108, %s109, %s110
      %p114 = pneg %p108
      %p115 = scmp.eq.s32.totalorder %s15, 5
      %p116 = por %p114, %p115
      %p117 = scmp.ne.s32.totalorder %s109, %s112
      %p118 = scmp.eq.s32.totalorder %s15, 0
      %p119 = por %p117, %p118
      %p120 = scmp.ne.s32.totalorder %s109, %s112
      %p121 = scmp.eq.s32.totalorder %s20, 5
      %p122 = por %p120, %p121
      %p123 = scmp.ne.s32.totalorder %s112, %s113
      %p124 = scmp.eq.s32.totalorder %s20, 0
      %p125 = por %p123, %p124
      %p126 = scmp.ne.s32.totalorder %s112, %s113
      %p127 = scmp.eq.s32.totalorder %s21, 5
      %p128 = por %p126, %p127
      %p130 = scmp.ne.s32.totalorder %s113, %s129
      %p131 = scmp.eq.s32.totalorder %s21, 0
      %p132 = por %p130, %p131
      %p133 = scmp.le.s32.totalorder 1, %s15
      %p134 = scmp.lt.s32.totalorder %s15, 7
      %p135 = pnand %p133, %p134
      %p136 = pneg %p135
      // Predicated region
      $region9: #{tpu_custom_call.1} parent=5 // pred_check
        _
      $region10: #{tpu_custom_call.1} parent=5 // pred_check_branch
        %138 = sbr.rel (%p135) target = $region12
      $region11: #{tpu_custom_call.1} parent=5 // pred_region
        %s139 = ssub.s32 %s15, 1
        // Predicated region
        $region13: #{tpu_custom_call.1} parent=11 // pred_check
          %p140 = pneg %p76
        $region14: #{tpu_custom_call.1} parent=11 // pred_check_branch
          %142 = sbr.rel (%p140) target = $region16
        $region15: #{tpu_custom_call.1} parent=11 // pred_region
          _
        $region16: #{tpu_custom_call.1} parent=11 // pred_fallthru
          _
        // Predicated region
        $region17: #{tpu_custom_call.1} parent=11 // pred_check
          %p143 = pneg %p97
        $region18: #{tpu_custom_call.1} parent=11 // pred_check_branch
          %145 = sbr.rel (%p143) target = $region20
        $region19: #{tpu_custom_call.1} parent=11 // pred_region
          _
        $region20: #{tpu_custom_call.1} parent=11 // pred_fallthru
          _
      $region12: #{tpu_custom_call.1} parent=5 // pred_fallthru
        _
      %p146 = scmp.lt.s32.totalorder %s15, 6
      // Predicated region
      $region21: #{tpu_custom_call.1} parent=5 // pred_check
        %p147 = pneg %p146
      $region22: #{tpu_custom_call.1} parent=5 // pred_check_branch
        %149 = sbr.rel (%p147) target = $region24
      $region23: #{tpu_custom_call.1} parent=5 // pred_region
        // Predicated region
        $region25: #{tpu_custom_call.1} parent=23 // pred_check
          %p150 = pneg %p49
        $region26: #{tpu_custom_call.1} parent=23 // pred_check_branch
          %152 = sbr.rel (%p150) target = $region28
        $region27: #{tpu_custom_call.1} parent=23 // pred_region
          %s153 = sand.u32 %s39, 1
          %s154 = scalar_lea.sflag [#allocation3], %s153
          %s155 = sand.u32 %s39, 1
          %s156 = smul.addr %s155, 8
          %s157 = scalar_lea.vmem [#allocation2], %s156
          %s159 = ssub.s32 128, 128
          %160 = vsyncadd %s154, %s159
          %s161 = smul.addr %s22, 3
          %s162 = sadd.s32 %s23, %s161
          %s163 = smul.addr %s162, 128
          %s164 = scalar_lea.hbm %s0, %s163
          %s166 = sshll.u32 %s157, 4
          %s167 = int_to_ptr.vmem [resolvable:$true] %s166
          %169 = dma.hbm_to_vmem [thread:$0]  %s164, 128, %s167, %s154
        $region28: #{tpu_custom_call.1} parent=23 // pred_fallthru
          _
      $region24: #{tpu_custom_call.1} parent=5 // pred_fallthru
        _
      %p170 = scmp.le.s32.totalorder 1, %s15
      %p171 = scmp.lt.s32.totalorder %s15, 7
      %p172 = pnand %p170, %p171
      %p173 = pneg %p172
      // Predicated region
      $region29: #{tpu_custom_call.1} parent=5 // pred_check
        _
      $region30: #{tpu_custom_call.1} parent=5 // pred_check_branch
        %175 = sbr.rel (%p172) target = $region32
      $region31: #{tpu_custom_call.1} parent=5 // pred_region
        %s176 = ssub.s32 %s15, 1
        %s177 = sand.u32 %s42, 1
        %s178 = scalar_lea.sflag [#allocation3], %s177
        %s179 = sand.u32 %s42, 1
        %s180 = smul.addr %s179, 8
        %s181 = scalar_lea.vmem [#allocation2], %s180
        // Predicated region
        $region33: #{tpu_custom_call.1} parent=31 // pred_check
          %p182 = pneg %p55
        $region34: #{tpu_custom_call.1} parent=31 // pred_check_branch
          %184 = sbr.rel (%p182) target = $region36
        $region35: #{tpu_custom_call.1} parent=31 // pred_region
          %185 = dma.done %s178, 128
        $region36: #{tpu_custom_call.1} parent=31 // pred_fallthru
          _
        %s186 = sand.u32 %s42, 1
        %s187 = scalar_lea.sflag [#allocation3], %s186
        %s188 = sand.u32 %s42, 1
        %s189 = smul.addr %s188, 8
        %s190 = scalar_lea.vmem [#allocation2], %s189
        %p191 = pneg %p55
        %p192 = pneg %p52
        %p193 = pneg %p76
        %p194 = pneg %p73
        %p195 = pneg %p97
        %p196 = pneg %p94
        %p197 = pneg %p125
        %p198 = pneg %p122
        %s199 = sand.u32 %s112, 1
        %s200 = scalar_lea.sflag [#allocation4], %s199
        %s201 = sand.u32 %s112, 1
        %s202 = smul.addr %s201, 16
        %s203 = scalar_lea.vmem [#allocation5], %s202
        %v204 = vld [vmem:[%s181] sm:$0xff]
        %v205 = vld [vmem:[%s1] sm:$0xff]
        %v206 = vld [vmem:[%s1 + $0x8] sm:$0xff]
        %v207 = vld [vmem:[%s2] sm:$0xff]
        %v208 = vld [vmem:[%s2 + $0x8] sm:$0xff]
        %210 = vset.pattern.permute.xlu0 0
        %211 = vperm.xlu0 %210, %v207
        %v212 = vpop.permute.xlu0 %211
        %215 = vset.pattern.permute.xlu0 0
        %216 = vperm.xlu0 %215, %v208
        %v217 = vpop.permute.xlu0 %216
        %vm219 = vcmask 64512
        %v221 = vsel %vm219, %v205, 0
        %v224 = vsel %vm219, %v206, 0
        %226 = vmatprep.subr.mxu0 0.0
        %227 = vmatpush1.msra.mxu0 %v204
        %228 = vmatprep.subr.mxu0 0.0
        %229 = vmatpush1.msra.mxu0 0.0
        %230 = vmatprep.subr.mxu0 0.0
        %231 = vmatpush1.msra.mxu0 0.0
        %232 = vmatprep.subr.mxu0 0.0
        %233 = vmatpush1.msra.mxu0 0.0
        %234 = vmatprep.subr.mxu0 0.0
        %235 = vmatpush1.msra.mxu0 0.0
        %236 = vmatprep.subr.mxu0 0.0
        %237 = vmatpush1.msra.mxu0 0.0
        %238 = vmatprep.subr.mxu0 0.0
        %239 = vmatpush1.msra.mxu0 0.0
        %240 = vmatprep.subr.mxu0 0.0
        %241 = vmatpush1.msra.mxu0 0.0
        %242 = vmatprep.subr.mxu0 0.0
        %243 = vmatpush1.msra.mxu0 0.0
        %244 = vmatprep.subr.mxu0 0.0
        %245 = vmatpush1.msra.mxu0 0.0
        %246 = vmatprep.subr.mxu0 0.0
        %247 = vmatpush1.msra.mxu0 0.0
        %248 = vmatprep.subr.mxu0 0.0
        %249 = vmatpush1.msra.mxu0 0.0
        %250 = vmatprep.subr.mxu0 0.0
        %251 = vmatpush1.msra.mxu0 0.0
        %252 = vmatprep.subr.mxu0 0.0
        %253 = vmatpush1.msra.mxu0 0.0
        %254 = vmatprep.subr.mxu0 0.0
        %255 = vmatpush1.msra.mxu0 0.0
        %256 = vmatprep.subr.mxu0 0.0
        %257 = vmatpush1.msra.mxu0 0.0
        %258 = vmatprep.subr.mxu0 0.0
        %259 = vmatpush1.msra.mxu0 0.0
        %260 = vmatprep.subr.mxu0 0.0
        %261 = vmatpush1.msra.mxu0 0.0
        %262 = vmatprep.subr.mxu0 0.0
        %263 = vmatpush1.msra.mxu0 0.0
        %264 = vmatprep.subr.mxu0 0.0
        %265 = vmatpush1.msra.mxu0 0.0
        %266 = vmatprep.subr.mxu0 0.0
        %267 = vmatpush1.msra.mxu0 0.0
        %268 = vmatprep.subr.mxu0 0.0
        %269 = vmatpush1.msra.mxu0 0.0
        %270 = vmatprep.subr.mxu0 0.0
        %271 = vmatpush1.msra.mxu0 0.0
        %272 = vmatprep.subr.mxu0 0.0
        %273 = vmatpush1.msra.mxu0 0.0
        %274 = vmatprep.subr.mxu0 0.0
        %275 = vmatpush1.msra.mxu0 0.0
        %276 = vmatprep.subr.mxu0 0.0
        %277 = vmatpush1.msra.mxu0 0.0
        %278 = vmatprep.subr.mxu0 0.0
        %279 = vmatpush1.msra.mxu0 0.0
        %280 = vmatprep.subr.mxu0 0.0
        %281 = vmatpush1.msra.mxu0 0.0
        %282 = vmatprep.subr.mxu0 0.0
        %283 = vmatpush1.msra.mxu0 0.0
        %284 = vmatprep.subr.mxu0 0.0
        %285 = vmatpush1.msra.mxu0 0.0
        %286 = vmatprep.subr.mxu0 0.0
        %287 = vmatpush1.msra.mxu0 0.0
        %288 = vmatprep.subr.mxu0 0.0
        %289 = vmatpush1.msra.mxu0 0.0
        %290 = vmatprep.mubr.f32.mxu0 0.0
        %291 = vmatmul.mubr.f32.gmra.mrb[0].mxu0 %v221
        %v292 = vpop.f32.mrb[0].mxu0
        %v293 = vadd.f32 %v212, %v292
        %v294 = vpop.f32.mrb[0].mxu0
        %295 = vmatprep.mubr.f32.mxu0 0.0
        %296 = vmatmul.mubr.f32.gmra.mrb[0].mxu0 %v224
        %v297 = vpop.f32.mrb[0].mxu0
        %v298 = vadd.f32 %v217, %v297
        %v299 = vpop.f32.mrb[0].mxu0
        %300 = vdwg.mxu0
        %301 = vst [vmem:[%s203] sm:$0xff] %v293
        %302 = vst [vmem:[%s203 + $0x8] sm:$0xff] %v298
        %s303 = sand.u32 %s112, 1
        %s304 = scalar_lea.sflag [#allocation4], %s303
        %s305 = sand.u32 %s112, 1
        %s306 = smul.addr %s305, 16
        %s307 = scalar_lea.vmem [#allocation5], %s306
        // Predicated region
        $region37: #{tpu_custom_call.1} parent=31 // pred_check
          %p308 = pneg %p122
        $region38: #{tpu_custom_call.1} parent=31 // pred_check_branch
          %310 = sbr.rel (%p308) target = $region40
        $region39: #{tpu_custom_call.1} parent=31 // pred_region
          %s312 = ssub.s32 256, 256
          %313 = vsyncadd %s304, %s312
          %s314 = smul.addr %s24, 6
          %s315 = sadd.s32 %s25, %s314
          %s316 = smul.addr %s315, 128
          %s317 = scalar_lea.hbm %s3, %s316
          %s318 = sshll.u32 %s307, 4
          %s319 = int_to_ptr.vmem [resolvable:$true] %s318
          %324 = dma.vmem_to_hbm [thread:$0]  %s319, 256, %s317, %s304, 128, 384, 8
        $region40: #{tpu_custom_call.1} parent=31 // pred_fallthru
          _
      $region32: #{tpu_custom_call.1} parent=5 // pred_fallthru
        _
      %p325 = scmp.le.s32.totalorder 2, %s15
      // Predicated region
      $region41: #{tpu_custom_call.1} parent=5 // pred_check
        %p326 = pneg %p325
      $region42: #{tpu_custom_call.1} parent=5 // pred_check_branch
        %328 = sbr.rel (%p326) target = $region44
      $region43: #{tpu_custom_call.1} parent=5 // pred_region
        %s329 = ssub.s32 %s15, 2
        // Predicated region
        $region45: #{tpu_custom_call.1} parent=43 // pred_check
          %p330 = pneg %p128
        $region46: #{tpu_custom_call.1} parent=43 // pred_check_branch
          %332 = sbr.rel (%p330) target = $region48
        $region47: #{tpu_custom_call.1} parent=43 // pred_region
          %s333 = sand.u32 %s113, 1
          %s334 = scalar_lea.sflag [#allocation4], %s333
          %s335 = sand.u32 %s113, 1
          %s336 = smul.addr %s335, 16
          %s337 = scalar_lea.vmem [#allocation5], %s336
          %338 = dma.done %s334, 256
        $region48: #{tpu_custom_call.1} parent=43 // pred_fallthru
          _
      $region44: #{tpu_custom_call.1} parent=5 // pred_fallthru
        _
    $region6: #{tpu_custom_call.1} parent=1 // loop_footer
      %s19 = sadd.s32 1, %s15
    $region7: #{tpu_custom_call.1} parent=1 // loop_footer_branch
      %14 = sbr.rel target = $region3
    $region8: #{tpu_custom_call.1} parent=1 // loop_exit
      _
    %339 = vsyncpa [#allocation3], 1
    %s340 = scalar_lea.sflag [#allocation3], 1
    %341 = vsyncpa %s340, 1
    %342 = vsyncpa [#allocation4], 1
    %s343 = scalar_lea.sflag [#allocation4], 1
    %344 = vsyncpa %s343, 1

</llo_original>
